<compile_context>
chip_gen: v7x
topology: tpu7x:2x2x1
jax: 0.10.0
libtpu: 0.0.40
codegen_flags: <defaults>
</compile_context>

<pallas_src>
import functools

import jax
import jax.numpy as jnp
import numpy as np
from jax.experimental import pallas as pl
from jax.experimental.pallas import tpu as pltpu


def _factor_kernel(kernel_size):
    """Largest k1 <= sqrt(K) dividing K (1 => no useful two-level split)."""
    best = 1
    d = 2
    while d * d <= kernel_size:
        if kernel_size % d == 0:
            best = d
        d += 1
    return best


def _series_decomp_kernel(x_ref, res_ref, mean_ref, xp_ref, *scratch,
                          kernel_size, k1):
    """One block: x_ref (L, nb) -> res_ref, mean_ref (L, nb).

    Time runs along sublanes; channels (and batch, in the fold path) run
    along lanes.  Works for both layout paths (the batch dim is Squeezed).
    """
    pad = kernel_size // 2
    L, nb = x_ref.shape
    inv_k = 1.0 / kernel_size

    # Stage x into a zero-padded scratch so every window read below is a
    # plain static sublane slice (AvgPool1d zero padding, divisor always K).
    if pad > 0:
        xp_ref[0:pad, :] = jnp.zeros((pad, nb), jnp.float32)
        xp_ref[pad + L:pad + L + pad, :] = jnp.zeros((pad, nb), jnp.float32)
    xp_ref[pad:pad + L, :] = x_ref[...].astype(jnp.float32)

    if scratch:                      # two-level k1 x k2 windowed sum
        p_ref = scratch[0]
        k2 = kernel_size // k1
        lp = L + 2 * pad - (k1 - 1)
        p = xp_ref[0:lp, :]
        for d in range(1, k1):       # static unroll, VPU shifted adds
            p = p + xp_ref[d:d + lp, :]
        p_ref[...] = p
        acc = p_ref[0:L, :]
        for j in range(1, k2):
            acc = acc + p_ref[j * k1:j * k1 + L, :]
    else:                            # flat K-term shifted add (prime / tiny K)
        acc = xp_ref[0:L, :]
        for d in range(1, kernel_size):
            acc = acc + xp_ref[d:d + L, :]

    mean = acc * inv_k
    mean_ref[...] = mean.astype(mean_ref.dtype)
    # Residual recomputed from the staged scratch -- no separate x32 copy.
    res_ref[...] = (xp_ref[pad:pad + L, :] - mean).astype(res_ref.dtype)


def _vmem_params():
    """(per-block lane budget bytes, vmem_limit_bytes) -- generation aware."""
    try:
        cap = int(pltpu.get_tpu_info().vmem_capacity_bytes)
    except Exception:
        cap = 64 * 1024 * 1024
    if cap <= 64 * 1024 * 1024:                    # v7x-class: 64 MiB / TC
        return 12 * 1024 * 1024, 28 * 1024 * 1024
    return 28 * 1024 * 1024, 80 * 1024 * 1024      # v5e / v6e: 128 MiB


def _per_lane_bytes(L, pad, k1, itemsize):
    """Resident VMEM bytes per lane column of one block: pipelined buffers,
    scratches, and the in-kernel f32 temporaries."""
    lp = L + 2 * pad - (k1 - 1) if k1 > 1 else 0
    return (6 * L * itemsize          # x (x2 bufs) + 2 outputs (x2 bufs)
            + (L + 2 * pad) * 4       # zero-padded staging scratch
            + 2 * lp * 4              # P scratch + its build temporary
            + 2 * L * 4)              # acc / mean temporaries


def _pick_block(n, per_col, budget, other_steps=1):
    """Largest lane block (multiple of 128, divides n, fits the VMEM budget)
    that still leaves >= 4 (else >= 2) total grid steps when n allows."""
    max_cols = max(128, min(n, budget // max(per_col, 1)))
    cands = []
    blk = 128
    while blk <= n:
        if n % blk == 0 and blk <= max_cols:
            cands.append(blk)
        blk *= 2
    if not cands:
        cands = [128]
    for min_steps in (4, 2, 1):
        ok = [b for b in cands if other_steps * (n // b) >= min_steps]
        if ok:
            return max(ok)
    return cands[-1]


def series_decomposition(x, kernel_size=25):
    """x: (B, L, C) -> (seasonal, trend), both (B, L, C).

    Matches nn.AvgPool1d(kernel_size, stride=1, padding=kernel_size // 2)
    applied along L (zero padding, count_include_pad=True), i.e. the exact
    PyTorch module in the spec.
    """
    assert kernel_size % 2 == 1, "padding=K//2 preserves length only for odd K"
    B, L, C = x.shape
    pad = kernel_size // 2
    k1 = _factor_kernel(kernel_size)
    lp = L + 2 * pad - (k1 - 1)

    itemsize = jnp.dtype(x.dtype).itemsize
    budget, vmem_limit = _vmem_params()
    per_col = _per_lane_bytes(L, pad, k1, itemsize)

    kern = functools.partial(_series_decomp_kernel,
                             kernel_size=kernel_size, k1=k1)

    def scratches(nb):
        s = [pltpu.VMEM((L + 2 * pad, nb), jnp.float32)]
        if k1 > 1:
            s.append(pltpu.VMEM((lp, nb), jnp.float32))
        return s

    def cparams(sem):
        return pltpu.CompilerParams(dimension_semantics=sem,
                                    vmem_limit_bytes=vmem_limit)

    if C % 128 == 0:
        # Fast path: native (B, L, C) layout, no wrapper transposes at all.
        c_blk = _pick_block(C, per_col, budget, other_steps=B)

        def spec():
            return pl.BlockSpec((pl.Squeezed(), L, c_blk),
                                lambda b, j: (b, 0, j))

        seasonal, trend = pl.pallas_call(
            kern,
            out_shape=(jax.ShapeDtypeStruct((B, L, C), x.dtype),
                       jax.ShapeDtypeStruct((B, L, C), x.dtype)),
            grid_spec=pltpu.PrefetchScalarGridSpec(
                num_scalar_prefetch=0,
                grid=(B, C // c_blk),
                in_specs=[spec()],
                out_specs=[spec(), spec()],
                scratch_shapes=scratches(c_blk)),
            compiler_params=cparams(("parallel", "parallel")),
        )(x)
        return seasonal, trend

    # Fold path (small / ragged C): (B, L, C) -> (L, B*C), lanes padded to 128.
    N = B * C
    Np = ((N + 127) // 128) * 128
    xt = jnp.transpose(x, (1, 0, 2)).reshape(L, N)
    if Np != N:
        xt = jnp.pad(xt, ((0, 0), (0, Np - N)))
    nb = _pick_block(Np, per_col, budget, other_steps=1)

    res_t, mean_t = pl.pallas_call(
        kern,
        out_shape=(jax.ShapeDtypeStruct((L, Np), x.dtype),
                   jax.ShapeDtypeStruct((L, Np), x.dtype)),
        grid_spec=pltpu.PrefetchScalarGridSpec(
            num_scalar_prefetch=0,
            grid=(Np // nb,),
            in_specs=[pl.BlockSpec((L, nb), lambda j: (0, j))],
            out_specs=[pl.BlockSpec((L, nb), lambda j: (0, j)),
                       pl.BlockSpec((L, nb), lambda j: (0, j))],
            scratch_shapes=scratches(nb)),
        compiler_params=cparams(("parallel",)),
    )(xt)

    seasonal = res_t[:, :N].reshape(L, B, C).transpose(1, 0, 2)
    trend = mean_t[:, :N].reshape(L, B, C).transpose(1, 0, 2)
    return seasonal, trend


def _reference(x, kernel_size=25):
    """Pure-JAX reference matching torch AvgPool1d(k, 1, k//2) semantics."""
    pad = kernel_size // 2
    L = x.shape[1]
    xp = jnp.pad(x, ((0, 0), (pad, pad), (0, 0)))
    windows = jnp.stack([xp[:, d:d + L, :] for d in range(kernel_size)], axis=0)
    mean = windows.sum(0) / kernel_size          # count_include_pad=True
    return x - mean, mean


if __name__ == "__main__":
    key = jax.random.PRNGKey(0)
    k_small, k_big = jax.random.split(key)

    # Fold path (small / ragged channel count).
    x_small = jax.random.normal(k_small, (2, 16, 4), jnp.float32)
    s1, t1 = series_decomposition(x_small, kernel_size=25)
    s1, t1 = jax.block_until_ready((s1, t1))
    rs1, rt1 = _reference(x_small, kernel_size=25)
    np.testing.assert_allclose(np.asarray(t1), np.asarray(rt1), rtol=1e-5, atol=1e-5)
    np.testing.assert_allclose(np.asarray(s1), np.asarray(rs1), rtol=1e-5, atol=1e-5)

    # Native-layout fast path (C multiple of 128, no wrapper transposes).
    x_big = jax.random.normal(k_big, (2, 16, 128), jnp.float32)
    s2, t2 = series_decomposition(x_big, kernel_size=25)
    s2, t2 = jax.block_until_ready((s2, t2))
    rs2, rt2 = _reference(x_big, kernel_size=25)
    np.testing.assert_allclose(np.asarray(t2), np.asarray(rt2), rtol=1e-5, atol=1e-5)
    np.testing.assert_allclose(np.asarray(s2), np.asarray(rs2), rtol=1e-5, atol=1e-5)

    print("KERNEL_OK")
</pallas_src>

<mosaic_0001>
module attributes {stable_mosaic.version = 11 : i64} {
  func.func @_series_decomp_kernel(%arg0: i32, %arg1: memref<16x128xf32, #tpu.memory_space<vmem>>, %arg2: memref<16x128xf32, #tpu.memory_space<vmem>>, %arg3: memref<16x128xf32, #tpu.memory_space<vmem>>, %arg4: memref<40x128xf32, #tpu.memory_space<vmem>>, %arg5: memref<36x128xf32, #tpu.memory_space<vmem>>) attributes {dimension_semantics = [#tpu.dimension_semantics<parallel>], iteration_bounds = array<i64: 1>, scalar_prefetch = 0 : i64, scratch_operands = 2 : i64, tpu.core_type = #tpu.core_type<tc>, window_params = [{transform_indices = @transform_0, window_bounds = array<i64: 16, 128>}, {transform_indices = @transform_1, window_bounds = array<i64: 16, 128>}, {transform_indices = @transform_2, window_bounds = array<i64: 16, 128>}]} {
    %cst = arith.constant 0.000000e+00 : f32
    %0 = vector.broadcast %cst : f32 to vector<12x128xf32>
    %c0 = arith.constant 0 : index
    %c0_0 = arith.constant 0 : index
    %1 = vector.load %arg4[%c0, %c0_0] : memref<40x128xf32, #tpu.memory_space<vmem>>, vector<12x128xf32>
    tpu.vector_store %arg4[%c0, %c0_0], %0 {strides = array<i32>} : memref<40x128xf32, #tpu.memory_space<vmem>>, vector<12x128xf32>,
    %cst_1 = arith.constant 0.000000e+00 : f32
    %2 = vector.broadcast %cst_1 : f32 to vector<12x128xf32>
    %c28 = arith.constant 28 : index
    %c0_2 = arith.constant 0 : index
    %3 = vector.load %arg4[%c28, %c0_2] : memref<40x128xf32, #tpu.memory_space<vmem>>, vector<12x128xf32>
    tpu.vector_store %arg4[%c28, %c0_2], %2 {strides = array<i32>} : memref<40x128xf32, #tpu.memory_space<vmem>>, vector<12x128xf32>,
    %c0_3 = arith.constant 0 : index
    %c0_4 = arith.constant 0 : index
    %4 = vector.load %arg1[%c0_3, %c0_4] : memref<16x128xf32, #tpu.memory_space<vmem>>, vector<16x128xf32>
    %c12 = arith.constant 12 : index
    %c0_5 = arith.constant 0 : index
    %5 = vector.load %arg4[%c12, %c0_5] : memref<40x128xf32, #tpu.memory_space<vmem>>, vector<16x128xf32>
    tpu.vector_store %arg4[%c12, %c0_5], %4 {strides = array<i32>} : memref<40x128xf32, #tpu.memory_space<vmem>>, vector<16x128xf32>,
    %c0_6 = arith.constant 0 : index
    %c0_7 = arith.constant 0 : index
    %6 = vector.load %arg4[%c0_6, %c0_7] : memref<40x128xf32, #tpu.memory_space<vmem>>, vector<36x128xf32>
    %c1 = arith.constant 1 : index
    %c0_8 = arith.constant 0 : index
    %7 = vector.load %arg4[%c1, %c0_8] : memref<40x128xf32, #tpu.memory_space<vmem>>, vector<36x128xf32>
    %8 = arith.addf %6, %7 : vector<36x128xf32>
    %c2 = arith.constant 2 : index
    %c0_9 = arith.constant 0 : index
    %9 = vector.load %arg4[%c2, %c0_9] : memref<40x128xf32, #tpu.memory_space<vmem>>, vector<36x128xf32>
    %10 = arith.addf %8, %9 : vector<36x128xf32>
    %c3 = arith.constant 3 : index
    %c0_10 = arith.constant 0 : index
    %11 = vector.load %arg4[%c3, %c0_10] : memref<40x128xf32, #tpu.memory_space<vmem>>, vector<36x128xf32>
    %12 = arith.addf %10, %11 : vector<36x128xf32>
    %c4 = arith.constant 4 : index
    %c0_11 = arith.constant 0 : index
    %13 = vector.load %arg4[%c4, %c0_11] : memref<40x128xf32, #tpu.memory_space<vmem>>, vector<36x128xf32>
    %14 = arith.addf %12, %13 : vector<36x128xf32>
    %c0_12 = arith.constant 0 : index
    %c0_13 = arith.constant 0 : index
    %15 = vector.load %arg5[%c0_12, %c0_13] : memref<36x128xf32, #tpu.memory_space<vmem>>, vector<36x128xf32>
    tpu.vector_store %arg5[%c0_12, %c0_13], %14 {strides = array<i32>} : memref<36x128xf32, #tpu.memory_space<vmem>>, vector<36x128xf32>,
    %c0_14 = arith.constant 0 : index
    %c0_15 = arith.constant 0 : index
    %16 = vector.load %arg5[%c0_14, %c0_15] : memref<36x128xf32, #tpu.memory_space<vmem>>, vector<16x128xf32>
    %c5 = arith.constant 5 : index
    %c0_16 = arith.constant 0 : index
    %17 = vector.load %arg5[%c5, %c0_16] : memref<36x128xf32, #tpu.memory_space<vmem>>, vector<16x128xf32>
    %18 = arith.addf %16, %17 : vector<16x128xf32>
    %c10 = arith.constant 10 : index
    %c0_17 = arith.constant 0 : index
    %19 = vector.load %arg5[%c10, %c0_17] : memref<36x128xf32, #tpu.memory_space<vmem>>, vector<16x128xf32>
    %20 = arith.addf %18, %19 : vector<16x128xf32>
    %c15 = arith.constant 15 : index
    %c0_18 = arith.constant 0 : index
    %21 = vector.load %arg5[%c15, %c0_18] : memref<36x128xf32, #tpu.memory_space<vmem>>, vector<16x128xf32>
    %22 = arith.addf %20, %21 : vector<16x128xf32>
    %c20 = arith.constant 20 : index
    %c0_19 = arith.constant 0 : index
    %23 = vector.load %arg5[%c20, %c0_19] : memref<36x128xf32, #tpu.memory_space<vmem>>, vector<16x128xf32>
    %24 = arith.addf %22, %23 : vector<16x128xf32>
    %cst_20 = arith.constant 4.000000e-02 : f32
    %25 = vector.broadcast %cst_20 : f32 to vector<16x128xf32>
    %26 = arith.mulf %24, %25 : vector<16x128xf32>
    %c0_21 = arith.constant 0 : index
    %c0_22 = arith.constant 0 : index
    %27 = vector.load %arg3[%c0_21, %c0_22] : memref<16x128xf32, #tpu.memory_space<vmem>>, vector<16x128xf32>
    tpu.vector_store %arg3[%c0_21, %c0_22], %26 {strides = array<i32>} : memref<16x128xf32, #tpu.memory_space<vmem>>, vector<16x128xf32>,
    %c12_23 = arith.constant 12 : index
    %c0_24 = arith.constant 0 : index
    %28 = vector.load %arg4[%c12_23, %c0_24] : memref<40x128xf32, #tpu.memory_space<vmem>>, vector<16x128xf32>
    %29 = arith.subf %28, %26 : vector<16x128xf32>
    %c0_25 = arith.constant 0 : index
    %c0_26 = arith.constant 0 : index
    %30 = vector.load %arg2[%c0_25, %c0_26] : memref<16x128xf32, #tpu.memory_space<vmem>>, vector<16x128xf32>
    tpu.vector_store %arg2[%c0_25, %c0_26], %29 {strides = array<i32>} : memref<16x128xf32, #tpu.memory_space<vmem>>, vector<16x128xf32>,
    return
  }
  func.func @transform_0(%arg0: i32) -> (i32, i32) {
    %c0_i32 = arith.constant 0 : i32
    %c0_i32_0 = arith.constant 0 : i32
    return %c0_i32, %arg0 : i32, i32
  }
  func.func @transform_1(%arg0: i32) -> (i32, i32) {
    %c0_i32 = arith.constant 0 : i32
    %c0_i32_0 = arith.constant 0 : i32
    return %c0_i32, %arg0 : i32, i32
  }
  func.func @transform_2(%arg0: i32) -> (i32, i32) {
    %c0_i32 = arith.constant 0 : i32
    %c0_i32_0 = arith.constant 0 : i32
    return %c0_i32, %arg0 : i32, i32
  }
}

</mosaic_0001>

<llo_original>
// kernel: tpu_custom_call.1
$region0: #{tpu_custom_call.1}
  #allocation0 [shape = 'u32[]', space=smem, size = 0x4, offset = 0x4, fixed_abs, tag = 'smem constant byte address 0x4 - core index']
  #allocation1 [shape = 'u32[144,128]{1,0:T(1,128)}', space=vmem, size = 0x12000, scoped, tag = 'internal scratch']
  #allocation2 [shape = 'f32[40,128]{1,0:T(8,128)}', space=vmem, size = 0x5000, scoped, tag = 'scratch operand']
  #allocation3 [shape = 'f32[36,128]{1,0:T(8,128)}', space=vmem, size = 0x5000, scoped, tag = 'scratch operand']
  %s0 = inlined_call_operand.hbm [shape: f32[16,128], index: 0, kind: input, shape index: {}]
  %s1 = inlined_call_operand.hbm [shape: f32[16,128], index: 1, kind: output, shape index: {0}]
  %s2 = inlined_call_operand.hbm [shape: f32[16,128], index: 2, kind: output, shape index: {1}]
  %3 = xla_tuple %s1, %s2
  %s4 = sld [smem:[#allocation0]]
  $region26: #{tpu_custom_call.1} parent=0
    _
  %s6 = ssub.s32 1, %s4
  %s7 = scalar_select 0, %s6, %s4
  $region1: #{tpu_custom_call.1} parent=0
    #allocation4 [shape = 'u8[8192]{0}', space=vmem, size = 0x2000, scoped, tag = 'input window, operand 0, single buffered']
    #allocation5 [shape = 's32[1]{0}', space=sflag, size = 0x4, scoped, tag = 'scoped memory for tpu_custom_call.1']
    #allocation6 [shape = 's32[1]{0}', space=sflag, size = 0x4, scoped, tag = 'scoped memory for tpu_custom_call.1']
    #allocation7 [shape = 'u8[8192]{0}', space=vmem, size = 0x2000, scoped, tag = 'output window, operand 0, single buffered']
    #allocation8 [shape = 'u8[8192]{0}', space=vmem, size = 0x2000, scoped, tag = 'output window, operand 1, single buffered']
    #allocation9 [shape = 's32[1]{0}', space=sflag, size = 0x4, scoped, tag = 'scoped memory for tpu_custom_call.1']
    %8 = vsyncpa [#allocation5], 0
    %9 = vsyncpa [#allocation6], 0
    %10 = vsyncpa [#allocation9], 0
    // Predicated region
    $region2: #{tpu_custom_call.1} parent=1 // pred_check
      _
    $region3: #{tpu_custom_call.1} parent=1 // pred_check_branch
      %12 = sbr.rel (0) target = $region5
    $region4: #{tpu_custom_call.1} parent=1 // pred_region
      %s14 = ssub.s32 256, 256
      %15 = vsyncadd [#allocation5], %s14
      %s16 = sshll.u32 [#allocation4], 4
      %s17 = int_to_ptr.vmem [resolvable:$true] %s16
      %22 = dma.hbm_to_vmem [thread:$0]  %s0, 256, %s17, [#allocation5], 128, 128, 8
    $region5: #{tpu_custom_call.1} parent=1 // pred_fallthru
      _
    // Predicated region
    $region6: #{tpu_custom_call.1} parent=1 // pred_check
      _
    $region7: #{tpu_custom_call.1} parent=1 // pred_check_branch
      %24 = sbr.rel (0) target = $region9
    $region8: #{tpu_custom_call.1} parent=1 // pred_region
      %25 = dma.done [#allocation5], 256
    $region9: #{tpu_custom_call.1} parent=1 // pred_fallthru
      _
    %26 = vst [vmem:[#allocation2] sm:$0xff] 0.0
    %27 = vst [vmem:[#allocation2 + $0x8] sm:$0xf] 0.0
    %28 = vst [vmem:[#allocation2 + $0x1c] sm:$0xff] 0.0
    %29 = vst [vmem:[#allocation2 + $0x24] sm:$0xf] 0.0
    %v30 = vld [vmem:[#allocation4] sm:$0xff]
    %v31 = vld [vmem:[#allocation4 + $0x8] sm:$0xff]
    %32 = vst [vmem:[#allocation2 + $0xc] sm:$0xff] %v30
    %33 = vst [vmem:[#allocation2 + $0x14] sm:$0xff] %v31
    %v34 = vld [vmem:[#allocation2] sm:$0xff]
    %v35 = vld [vmem:[#allocation2 + $0x8] sm:$0xff]
    %v36 = vld [vmem:[#allocation2 + $0x10] sm:$0xff]
    %v37 = vld [vmem:[#allocation2 + $0x18] sm:$0xff]
    %v38 = vld [vmem:[#allocation2 + $0x20] sm:$0xf]
    %v39 = vld [vmem:[#allocation2 + $0x1] sm:$0xff]
    %v40 = vld [vmem:[#allocation2 + $0x9] sm:$0xff]
    %v41 = vld [vmem:[#allocation2 + $0x11] sm:$0xff]
    %v42 = vld [vmem:[#allocation2 + $0x19] sm:$0xff]
    %v43 = vld [vmem:[#allocation2 + $0x21] sm:$0xf]
    %v44 = vadd.f32 %v34, %v39
    %v45 = vadd.f32 %v35, %v40
    %v46 = vadd.f32 %v36, %v41
    %v47 = vadd.f32 %v37, %v42
    %v48 = vadd.f32 %v38, %v43
    %v49 = vld [vmem:[#allocation2 + $0x2] sm:$0xff]
    %v50 = vld [vmem:[#allocation2 + $0xa] sm:$0xff]
    %v51 = vld [vmem:[#allocation2 + $0x12] sm:$0xff]
    %v52 = vld [vmem:[#allocation2 + $0x1a] sm:$0xff]
    %v53 = vld [vmem:[#allocation2 + $0x22] sm:$0xf]
    %v54 = vadd.f32 %v44, %v49
    %v55 = vadd.f32 %v45, %v50
    %v56 = vadd.f32 %v46, %v51
    %v57 = vadd.f32 %v47, %v52
    %v58 = vadd.f32 %v48, %v53
    %v59 = vld [vmem:[#allocation2 + $0x3] sm:$0xff]
    %v60 = vld [vmem:[#allocation2 + $0xb] sm:$0xff]
    %v61 = vld [vmem:[#allocation2 + $0x13] sm:$0xff]
    %v62 = vld [vmem:[#allocation2 + $0x1b] sm:$0xff]
    %v63 = vld [vmem:[#allocation2 + $0x23] sm:$0xf]
    %v64 = vadd.f32 %v54, %v59
    %v65 = vadd.f32 %v55, %v60
    %v66 = vadd.f32 %v56, %v61
    %v67 = vadd.f32 %v57, %v62
    %v68 = vadd.f32 %v58, %v63
    %v69 = vld [vmem:[#allocation2 + $0x4] sm:$0xff]
    %v70 = vld [vmem:[#allocation2 + $0xc] sm:$0xff]
    %v71 = vld [vmem:[#allocation2 + $0x14] sm:$0xff]
    %v72 = vld [vmem:[#allocation2 + $0x1c] sm:$0xff]
    %v73 = vld [vmem:[#allocation2 + $0x24] sm:$0xf]
    %v74 = vadd.f32 %v64, %v69
    %v75 = vadd.f32 %v65, %v70
    %v76 = vadd.f32 %v66, %v71
    %v77 = vadd.f32 %v67, %v72
    %v78 = vadd.f32 %v68, %v73
    %79 = vst [vmem:[#allocation3] sm:$0xff] %v74
    %80 = vst [vmem:[#allocation3 + $0x8] sm:$0xff] %v75
    %81 = vst [vmem:[#allocation3 + $0x10] sm:$0xff] %v76
    %82 = vst [vmem:[#allocation3 + $0x18] sm:$0xff] %v77
    %83 = vst [vmem:[#allocation3 + $0x20] sm:$0xf] %v78
    %v84 = vld [vmem:[#allocation3] sm:$0xff]
    %v85 = vld [vmem:[#allocation3 + $0x8] sm:$0xff]
    %v86 = vld [vmem:[#allocation3 + $0x5] sm:$0xff]
    %v87 = vld [vmem:[#allocation3 + $0xd] sm:$0xff]
    %v88 = vadd.f32 %v84, %v86
    %v89 = vadd.f32 %v85, %v87
    %v90 = vld [vmem:[#allocation3 + $0xa] sm:$0xff]
    %v91 = vld [vmem:[#allocation3 + $0x12] sm:$0xff]
    %v92 = vadd.f32 %v88, %v90
    %v93 = vadd.f32 %v89, %v91
    %v94 = vld [vmem:[#allocation3 + $0xf] sm:$0xff]
    %v95 = vld [vmem:[#allocation3 + $0x17] sm:$0xff]
    %v96 = vadd.f32 %v92, %v94
    %v97 = vadd.f32 %v93, %v95
    %v98 = vld [vmem:[#allocation3 + $0x14] sm:$0xff]
    %v99 = vld [vmem:[#allocation3 + $0x1c] sm:$0xff]
    %v100 = vadd.f32 %v96, %v98
    %v101 = vadd.f32 %v97, %v99
    %v102 = vmul.f32 %v100, 0.04
    %v103 = vmul.f32 %v101, 0.04
    %104 = vst [vmem:[#allocation8] sm:$0xff] %v102
    %105 = vst [vmem:[#allocation8 + $0x8] sm:$0xff] %v103
    %v106 = vld [vmem:[#allocation2 + $0xc] sm:$0xff]
    %v107 = vld [vmem:[#allocation2 + $0x14] sm:$0xff]
    %v108 = vsub.f32 %v106, %v102
    %v109 = vsub.f32 %v107, %v103
    %110 = vst [vmem:[#allocation7] sm:$0xff] %v108
    %111 = vst [vmem:[#allocation7 + $0x8] sm:$0xff] %v109
    // Predicated region
    $region10: #{tpu_custom_call.1} parent=1 // pred_check
      _
    $region11: #{tpu_custom_call.1} parent=1 // pred_check_branch
      %113 = sbr.rel (0) target = $region13
    $region12: #{tpu_custom_call.1} parent=1 // pred_region
      %s115 = ssub.s32 256, 256
      %116 = vsyncadd [#allocation6], %s115
      %s117 = sshll.u32 [#allocation7], 4
      %s118 = int_to_ptr.vmem [resolvable:$true] %s117
      %123 = dma.vmem_to_hbm [thread:$0]  %s118, 256, %s1, [#allocation6], 128, 128, 8
    $region13: #{tpu_custom_call.1} parent=1 // pred_fallthru
      _
    // Predicated region
    $region14: #{tpu_custom_call.1} parent=1 // pred_check
      _
    $region15: #{tpu_custom_call.1} parent=1 // pred_check_branch
      %125 = sbr.rel (0) target = $region17
    $region16: #{tpu_custom_call.1} parent=1 // pred_region
      %s127 = ssub.s32 256, 256
      %128 = vsyncadd [#allocation9], %s127
      %s129 = sshll.u32 [#allocation8], 4
      %s130 = int_to_ptr.vmem [resolvable:$true] %s129
      %135 = dma.vmem_to_hbm [thread:$0]  %s130, 256, %s2, [#allocation9], 128, 128, 8
    $region17: #{tpu_custom_call.1} parent=1 // pred_fallthru
      _
    // Predicated region
    $region18: #{tpu_custom_call.1} parent=1 // pred_check
      _
    $region19: #{tpu_custom_call.1} parent=1 // pred_check_branch
      %137 = sbr.rel (0) target = $region21
    $region20: #{tpu_custom_call.1} parent=1 // pred_region
      %138 = dma.done [#allocation6], 256
    $region21: #{tpu_custom_call.1} parent=1 // pred_fallthru
      _
    // Predicated region
    $region22: #{tpu_custom_call.1} parent=1 // pred_check
      _
    $region23: #{tpu_custom_call.1} parent=1 // pred_check_branch
      %140 = sbr.rel (0) target = $region25
    $region24: #{tpu_custom_call.1} parent=1 // pred_region
      %141 = dma.done [#allocation9], 256
    $region25: #{tpu_custom_call.1} parent=1 // pred_fallthru
      _
    %142 = vsyncpa [#allocation5], 1
    %143 = vsyncpa [#allocation6], 1
    %144 = vsyncpa [#allocation9], 1

</llo_original>
